<compile_context>
chip_gen: v6e
topology: v6e:2x2x1
jax: 0.10.0
libtpu: 0.0.40
codegen_flags: <defaults>
</compile_context>

<pallas_src>
import functools

import jax
import jax.numpy as jnp
from jax.experimental import pallas as pl
from jax.experimental.pallas import tpu as pltpu


def _round_up(x, m):
    return ((x + m - 1) // m) * m


# ----------------------------------------------------------------------------
# One-time parameter preparation (hoisted out of the per-call jitted path).
# ----------------------------------------------------------------------------
def prepare_params(params, matmul_dtype=jnp.bfloat16):
    """Pad weights/biases to lane-dense (multiple-of-128) feature widths and
    pre-cast weights to the MXU dtype.  Do this ONCE, not per forward call.

    Returns (padded_params_tuple, out_dim) to be passed to
    `linear_layers_forward`.
    """
    dims = [params[0][0].shape[0]] + [w.shape[1] for (w, _) in params]
    # _round_up(d, 128) already maps widths in (128, 256] to 256 (good for the
    # 256-wide v6e/v7x MXU) while keeping widths <= 128 at 128 (no wasted
    # FLOPs/DMA for the small configs this head is used with).
    pdims = [_round_up(d, 128) for d in dims]
    w_dtype = jnp.float32 if matmul_dtype is None else matmul_dtype

    padded = []
    for l, (w, b) in enumerate(params):
        kin, nout = w.shape
        # Zero padding keeps padded lanes at exactly 0 through every
        # bias-add + ReLU, so there is no leakage into downstream layers.
        wp = (jnp.zeros((pdims[l], pdims[l + 1]), w_dtype)
              .at[:kin, :nout].set(w.astype(w_dtype)))
        bp = (jnp.zeros((1, pdims[l + 1]), jnp.float32)
              .at[0, :nout].set(b.astype(jnp.float32)))
        padded += [wp, bp]

    return tuple(jax.device_put(p) for p in padded), int(dims[-1])


# ----------------------------------------------------------------------------
# Fused kernel: relu(... relu(x @ W0 + b0) ... @ Wn-1 + bn-1)
# ----------------------------------------------------------------------------
def _make_fused_mlp_kernel(n_layers, matmul_dtype):
    """refs layout: (x_ref, w0_ref, b0_ref, ..., wN-1_ref, bN-1_ref, o_ref)."""
    compute_dtype = jnp.float32 if matmul_dtype is None else matmul_dtype

    def kernel(*refs):
        x_ref = refs[0]
        o_ref = refs[-1]
        h = x_ref[...]                      # cast lazily, exactly once per matmul
        for l in range(n_layers):
            w = refs[1 + 2 * l][...]        # pre-cast to compute_dtype in wrapper
            b = refs[2 + 2 * l][...]        # f32
            lhs = h if h.dtype == compute_dtype else h.astype(compute_dtype)
            y = jnp.dot(lhs, w, preferred_element_type=jnp.float32)   # f32 acc
            h = jnp.maximum(y + b.astype(jnp.float32), 0.0)           # f32 epilogue
        o_ref[...] = h.astype(o_ref.dtype)

    return kernel


@functools.partial(
    jax.jit,
    static_argnames=("out_dim", "tile_m", "matmul_dtype", "single_buffer_weights"))
def _linear_layers_forward_padded(x, padded_params, *, out_dim, tile_m,
                                  matmul_dtype, single_buffer_weights):
    M, K = x.shape
    n_layers = len(padded_params) // 2
    # Padded (lane-dense) feature widths, recovered from the padded params.
    pdims = [padded_params[0].shape[0]] + \
            [padded_params[2 * l].shape[1] for l in range(n_layers)]

    # ---- batch tiling -------------------------------------------------------
    m8 = _round_up(M, 8)                         # f32 sublane tile
    tm = min(_round_up(int(tile_m), 8), m8)
    # v7x megacore: for mid/large batches ensure >= 2 grid steps so the
    # "parallel" M axis can split across both TensorCores (one extra ~0.35us
    # grid step on single-TC v5e/v6e -- negligible).
    if m8 >= 128 and m8 // tm < 2:
        tm = _round_up((m8 + 1) // 2, 8)
    Mp = _round_up(m8, tm)
    grid_m = Mp // tm

    # Only x is padded per call (weights were padded once in prepare_params).
    xp = jnp.zeros((Mp, pdims[0]), x.dtype).at[:M, :K].set(x)

    # ---- block specs --------------------------------------------------------
    in_specs = [pl.BlockSpec((tm, pdims[0]), lambda i: (i, 0))]
    const_kwargs = {}
    if single_buffer_weights:
        # Constant index_map -> the block never changes; double-buffering it is
        # pure VMEM waste.  Keep a single resident copy.
        const_kwargs["pipeline_mode"] = pl.Buffered(1)
    for l in range(n_layers):
        in_specs.append(
            pl.BlockSpec((pdims[l], pdims[l + 1]), lambda i: (0, 0), **const_kwargs))
        in_specs.append(
            pl.BlockSpec((1, pdims[l + 1]), lambda i: (0, 0), **const_kwargs))
    out_spec = pl.BlockSpec((tm, pdims[-1]), lambda i: (i, 0))

    # ---- VMEM budget / limit ------------------------------------------------
    itemsize_x = jnp.dtype(x.dtype).itemsize
    bytes_w = sum(int(p.size) * jnp.dtype(p.dtype).itemsize for p in padded_params)
    w_copies = 1 if single_buffer_weights else 2
    bytes_io = 2 * tm * (pdims[0] + pdims[-1]) * itemsize_x        # double-buffered x/out tiles
    bytes_tmp = 4 * tm * max(pdims) * 4                            # f32 intermediates headroom
    vmem_need = w_copies * bytes_w + bytes_io + bytes_tmp
    if vmem_need > 48 * 1024 * 1024:
        # TODO(synk): fall back to tiling the layer/K dimension (extra grid axis
        # or pltpu.emit_pipeline over layers) for very large weight stacks
        # instead of keeping all weights resident (matters on v7x's 64 MiB VMEM).
        raise NotImplementedError(
            "Resident weight stack too large for single-pass fused kernel "
            f"({vmem_need} bytes); layer-tiled fallback not implemented.")
    # Never go below the v6e/v7x scoped default (32 MiB); raising above the v5e
    # default (16 MiB) is the point; cap at v7x physical (64 MiB).
    vmem_limit = int(min(max(2 * vmem_need, 32 * 1024 * 1024), 64 * 1024 * 1024))

    # ---- cost estimate (helps XLA schedule surrounding HLOs) ----------------
    flops = 2 * Mp * sum(pdims[l] * pdims[l + 1] for l in range(n_layers))
    bytes_accessed = (Mp * pdims[0] * itemsize_x
                      + bytes_w
                      + Mp * pdims[-1] * itemsize_x)
    cost = pl.CostEstimate(flops=flops, transcendentals=0,
                           bytes_accessed=bytes_accessed)

    out_padded = pl.pallas_call(
        _make_fused_mlp_kernel(n_layers, matmul_dtype),
        out_shape=jax.ShapeDtypeStruct((Mp, pdims[-1]), x.dtype),
        grid=(grid_m,),
        in_specs=in_specs,
        out_specs=out_spec,
        compiler_params=pltpu.CompilerParams(
            # M tiles are independent -> "parallel" lets v7x's two TensorCores
            # split the batch (harmless no-op on single-TC v5e/v6e).
            dimension_semantics=("parallel",),
            vmem_limit_bytes=vmem_limit),
        cost_estimate=cost,
    )(xp, *padded_params)

    # Slice away M / lane padding (padded rows compute relu(b) != 0 but are
    # discarded here; never read the padded region).
    return out_padded[:M, :out_dim]


# Remember whether single-buffered (pl.Buffered(1)) weight specs compile on the
# running jax version / backend, so we do not retry a failing path every call.
_SINGLE_BUFFER_WEIGHTS_OK = None


def linear_layers_forward(x, prepared, *, tile_m=256, matmul_dtype=jnp.bfloat16):
    """Forward pass of LinearLayers as ONE fused Pallas kernel.

    `prepared` = prepare_params(params, matmul_dtype).  Dropout (p=0.1) is
    identity in eval mode -> omitted.  `tile_m` can be raised to 512-1024 on
    v5e/v6e for very large batches (128 MiB VMEM); keep <=256 on v7x.
    """
    global _SINGLE_BUFFER_WEIGHTS_OK
    padded_params, out_dim = prepared
    kwargs = dict(out_dim=out_dim, tile_m=int(tile_m), matmul_dtype=matmul_dtype)

    if _SINGLE_BUFFER_WEIGHTS_OK is not False:
        try:
            out = _linear_layers_forward_padded(
                x, padded_params, single_buffer_weights=True, **kwargs)
            _SINGLE_BUFFER_WEIGHTS_OK = True
            return out
        except NotImplementedError:
            raise
        except Exception:
            # pl.Buffered(1) rejected by this jax/backend -> default buffering.
            _SINGLE_BUFFER_WEIGHTS_OK = False
    return _linear_layers_forward_padded(
        x, padded_params, single_buffer_weights=False, **kwargs)


# ----------------------------------------------------------------------------
# Parameter init mimicking torch.nn.Linear (uniform +/- 1/sqrt(in_features)).
# ----------------------------------------------------------------------------
def init_linear_params(key, in_features, out_features, dtype=jnp.float32):
    kw, kb = jax.random.split(key)
    bound = 1.0 / (in_features ** 0.5)
    # Stored as (in, out) so the kernel does x @ W directly.
    w = jax.random.uniform(kw, (in_features, out_features), dtype,
                           minval=-bound, maxval=bound)
    b = jax.random.uniform(kb, (out_features,), dtype,
                           minval=-bound, maxval=bound)
    return w, b


def make_linear_layers_params(key, in_ch, layers_description):
    params = []
    last = in_ch
    for out in layers_description:
        key, sub = jax.random.split(key)
        params.append(init_linear_params(sub, last, out))
        last = out
    return params


if __name__ == "__main__":
    # Module config: LinearLayers(in_ch=32, layers_description=(32, 16), dropout_rate=0.1)
    in_ch = 32
    layers_description = (32, 16)
    batch = 4

    key = jax.random.PRNGKey(0)
    key_x, key_p = jax.random.split(key)

    x = jax.random.normal(key_x, (batch, in_ch), dtype=jnp.float32)
    params = make_linear_layers_params(key_p, in_ch, layers_description)

    # Pure-JAX reference (eval mode: dropout == identity).
    ref = x
    for (w, b) in params:
        ref = jnp.maximum(ref @ w + b, 0.0)

    # (a) exact f32 MXU path -- tight tolerance.
    prep_f32 = prepare_params(params, matmul_dtype=None)
    out_f32 = jax.block_until_ready(
        linear_layers_forward(x, prep_f32, matmul_dtype=None))
    assert out_f32.shape == (batch, layers_description[-1]), out_f32.shape
    assert bool(jnp.allclose(out_f32, ref, atol=1e-5, rtol=1e-5)), \
        "f32 path mismatch vs pure-JAX reference"

    # (b) default bf16-MXU path (f32 accumulation + f32 epilogue) -- looser
    #     tolerance because MXU inputs are rounded to bf16.
    prep_bf16 = prepare_params(params, matmul_dtype=jnp.bfloat16)
    out_bf16 = jax.block_until_ready(
        linear_layers_forward(x, prep_bf16, matmul_dtype=jnp.bfloat16))
    assert out_bf16.shape == (batch, layers_description[-1]), out_bf16.shape
    assert bool(jnp.all(out_bf16 >= 0.0)), "ReLU output should be non-negative"
    assert bool(jnp.allclose(out_bf16, ref, atol=5e-2, rtol=5e-2)), \
        "bf16 path mismatch vs pure-JAX reference"

    print("KERNEL_OK")
</pallas_src>

<mosaic_0001>
module attributes {stable_mosaic.version = 11 : i64} {
  func.func @kernel(%arg0: i32, %arg1: memref<8x128xf32, #tpu.memory_space<vmem>>, %arg2: memref<128x128xf32, #tpu.memory_space<vmem>>, %arg3: memref<1x128xf32, #tpu.memory_space<vmem>>, %arg4: memref<128x128xf32, #tpu.memory_space<vmem>>, %arg5: memref<1x128xf32, #tpu.memory_space<vmem>>, %arg6: memref<8x128xf32, #tpu.memory_space<vmem>>) attributes {dimension_semantics = [#tpu.dimension_semantics<parallel>], iteration_bounds = array<i64: 1>, scalar_prefetch = 0 : i64, scratch_operands = 0 : i64, tpu.core_type = #tpu.core_type<tc>, window_params = [{transform_indices = @transform_0, window_bounds = array<i64: 8, 128>}, {pipeline_mode = #tpu.pipeline_mode<synchronous>, transform_indices = @transform_1, window_bounds = array<i64: 128, 128>}, {pipeline_mode = #tpu.pipeline_mode<synchronous>, transform_indices = @transform_2, window_bounds = array<i64: 1, 128>}, {pipeline_mode = #tpu.pipeline_mode<synchronous>, transform_indices = @transform_3, window_bounds = array<i64: 128, 128>}, {pipeline_mode = #tpu.pipeline_mode<synchronous>, transform_indices = @transform_4, window_bounds = array<i64: 1, 128>}, {transform_indices = @transform_5, window_bounds = array<i64: 8, 128>}]} {
    %c0 = arith.constant 0 : index
    %c0_0 = arith.constant 0 : index
    %0 = vector.load %arg1[%c0, %c0_0] : memref<8x128xf32, #tpu.memory_space<vmem>>, vector<8x128xf32>
    %c0_1 = arith.constant 0 : index
    %c0_2 = arith.constant 0 : index
    %1 = vector.load %arg2[%c0_1, %c0_2] : memref<128x128xf32, #tpu.memory_space<vmem>>, vector<128x128xf32>
    %c0_3 = arith.constant 0 : index
    %c0_4 = arith.constant 0 : index
    %2 = vector.load %arg3[%c0_3, %c0_4] : memref<1x128xf32, #tpu.memory_space<vmem>>, vector<1x128xf32>
    %cst = arith.constant dense<0.000000e+00> : vector<8x128xf32>
    %3 = tpu.matmul %0, %1, %cst {dimension_numbers = #tpu.dot_dimension_numbers<[1], [0], [0], [1], [0, 0, 1, 1], [], []>} : vector<8x128xf32>, vector<128x128xf32>, vector<8x128xf32> -> vector<8x128xf32>
    %4 = vector.broadcast %2 : vector<1x128xf32> to vector<8x128xf32>
    %5 = arith.addf %3, %4 : vector<8x128xf32>
    %cst_5 = arith.constant 0.000000e+00 : f32
    %6 = vector.broadcast %cst_5 : f32 to vector<8x128xf32>
    %7 = arith.maximumf %5, %6 : vector<8x128xf32>
    %c0_6 = arith.constant 0 : index
    %c0_7 = arith.constant 0 : index
    %8 = vector.load %arg4[%c0_6, %c0_7] : memref<128x128xf32, #tpu.memory_space<vmem>>, vector<128x128xf32>
    %c0_8 = arith.constant 0 : index
    %c0_9 = arith.constant 0 : index
    %9 = vector.load %arg5[%c0_8, %c0_9] : memref<1x128xf32, #tpu.memory_space<vmem>>, vector<1x128xf32>
    %cst_10 = arith.constant dense<0.000000e+00> : vector<8x128xf32>
    %10 = tpu.matmul %7, %8, %cst_10 {dimension_numbers = #tpu.dot_dimension_numbers<[1], [0], [0], [1], [0, 0, 1, 1], [], []>} : vector<8x128xf32>, vector<128x128xf32>, vector<8x128xf32> -> vector<8x128xf32>
    %11 = vector.broadcast %9 : vector<1x128xf32> to vector<8x128xf32>
    %12 = arith.addf %10, %11 : vector<8x128xf32>
    %cst_11 = arith.constant 0.000000e+00 : f32
    %13 = vector.broadcast %cst_11 : f32 to vector<8x128xf32>
    %14 = arith.maximumf %12, %13 : vector<8x128xf32>
    %c0_12 = arith.constant 0 : index
    %c0_13 = arith.constant 0 : index
    %15 = vector.load %arg6[%c0_12, %c0_13] : memref<8x128xf32, #tpu.memory_space<vmem>>, vector<8x128xf32>
    tpu.vector_store %arg6[%c0_12, %c0_13], %14 {strides = array<i32>} : memref<8x128xf32, #tpu.memory_space<vmem>>, vector<8x128xf32>,
    return
  }
  func.func @transform_0(%arg0: i32) -> (i32, i32) {
    %c0_i32 = arith.constant 0 : i32
    %c0_i32_0 = arith.constant 0 : i32
    return %arg0, %c0_i32 : i32, i32
  }
  func.func @transform_1(%arg0: i32) -> (i32, i32) {
    %c0_i32 = arith.constant 0 : i32
    %c0_i32_0 = arith.constant 0 : i32
    %c0_i32_1 = arith.constant 0 : i32
    return %c0_i32, %c0_i32_0 : i32, i32
  }
  func.func @transform_2(%arg0: i32) -> (i32, i32) {
    %c0_i32 = arith.constant 0 : i32
    %c0_i32_0 = arith.constant 0 : i32
    %c0_i32_1 = arith.constant 0 : i32
    return %c0_i32, %c0_i32_0 : i32, i32
  }
  func.func @transform_3(%arg0: i32) -> (i32, i32) {
    %c0_i32 = arith.constant 0 : i32
    %c0_i32_0 = arith.constant 0 : i32
    %c0_i32_1 = arith.constant 0 : i32
    return %c0_i32, %c0_i32_0 : i32, i32
  }
  func.func @transform_4(%arg0: i32) -> (i32, i32) {
    %c0_i32 = arith.constant 0 : i32
    %c0_i32_0 = arith.constant 0 : i32
    %c0_i32_1 = arith.constant 0 : i32
    return %c0_i32, %c0_i32_0 : i32, i32
  }
  func.func @transform_5(%arg0: i32) -> (i32, i32) {
    %c0_i32 = arith.constant 0 : i32
    %c0_i32_0 = arith.constant 0 : i32
    return %arg0, %c0_i32 : i32, i32
  }
}

module attributes {stable_mosaic.version = 11 : i64} {
  func.func @kernel(%arg0: i32, %arg1: memref<8x128xf32, #tpu.memory_space<vmem>>, %arg2: memref<128x128xf32, #tpu.memory_space<vmem>>, %arg3: memref<1x128xf32, #tpu.memory_space<vmem>>, %arg4: memref<128x128xf32, #tpu.memory_space<vmem>>, %arg5: memref<1x128xf32, #tpu.memory_space<vmem>>, %arg6: memref<8x128xf32, #tpu.memory_space<vmem>>) attributes {dimension_semantics = [#tpu.dimension_semantics<parallel>], iteration_bounds = array<i64: 1>, scalar_prefetch = 0 : i64, scratch_operands = 0 : i64, tpu.core_type = #tpu.core_type<tc>, window_params = [{transform_indices = @transform_0, window_bounds = array<i64: 8, 128>}, {pipeline_mode = #tpu.pipeline_mode<synchronous>, transform_indices = @transform_1, window_bounds = array<i64: 128, 128>}, {pipeline_mode = #tpu.pipeline_mode<synchronous>, transform_indices = @transform_2, window_bounds = array<i64: 1, 128>}, {pipeline_mode = #tpu.pipeline_mode<synchronous>, transform_indices = @transform_3, window_bounds = array<i64: 128, 128>}, {pipeline_mode = #tpu.pipeline_mode<synchronous>, transform_indices = @transform_4, window_bounds = array<i64: 1, 128>}, {transform_indices = @transform_5, window_bounds = array<i64: 8, 128>}]} {
    %c0 = arith.constant 0 : index
    %c0_0 = arith.constant 0 : index
    %0 = vector.load %arg1[%c0, %c0_0] : memref<8x128xf32, #tpu.memory_space<vmem>>, vector<8x128xf32>
    %c0_1 = arith.constant 0 : index
    %c0_2 = arith.constant 0 : index
    %1 = vector.load %arg2[%c0_1, %c0_2] : memref<128x128xf32, #tpu.memory_space<vmem>>, vector<128x128xf32>
    %c0_3 = arith.constant 0 : index
    %c0_4 = arith.constant 0 : index
    %2 = vector.load %arg3[%c0_3, %c0_4] : memref<1x128xf32, #tpu.memory_space<vmem>>, vector<1x128xf32>
    %cst = arith.constant dense<0.000000e+00> : vector<8x128xf32>
    %3 = tpu.matmul %0, %1, %cst {dimension_numbers = #tpu.dot_dimension_numbers<[1], [0], [0], [1], [0, 0, 1, 1], [], []>} : vector<8x128xf32>, vector<128x128xf32>, vector<8x128xf32> -> vector<8x128xf32>
    %4 = vector.broadcast %2 : vector<1x128xf32> to vector<8x128xf32>
    %5 = arith.addf %3, %4 : vector<8x128xf32>
    %cst_5 = arith.constant 0.000000e+00 : f32
    %6 = vector.broadcast %cst_5 : f32 to vector<8x128xf32>
    %7 = arith.maximumf %5, %6 : vector<8x128xf32>
    %c0_6 = arith.constant 0 : index
    %c0_7 = arith.constant 0 : index
    %8 = vector.load %arg4[%c0_6, %c0_7] : memref<128x128xf32, #tpu.memory_space<vmem>>, vector<128x128xf32>
    %c0_8 = arith.constant 0 : index
    %c0_9 = arith.constant 0 : index
    %9 = vector.load %arg5[%c0_8, %c0_9] : memref<1x128xf32, #tpu.memory_space<vmem>>, vector<1x128xf32>
    %cst_10 = arith.constant dense<0.000000e+00> : vector<8x128xf32>
    %10 = tpu.matmul %7, %8, %cst_10 {dimension_numbers = #tpu.dot_dimension_numbers<[1], [0], [0], [1], [0, 0, 1, 1], [], []>} : vector<8x128xf32>, vector<128x128xf32>, vector<8x128xf32> -> vector<8x128xf32>
    %11 = vector.broadcast %9 : vector<1x128xf32> to vector<8x128xf32>
    %12 = arith.addf %10, %11 : vector<8x128xf32>
    %cst_11 = arith.constant 0.000000e+00 : f32
    %13 = vector.broadcast %cst_11 : f32 to vector<8x128xf32>
    %14 = arith.maximumf %12, %13 : vector<8x128xf32>
    %c0_12 = arith.constant 0 : index
    %c0_13 = arith.constant 0 : index
    %15 = vector.load %arg6[%c0_12, %c0_13] : memref<8x128xf32, #tpu.memory_space<vmem>>, vector<8x128xf32>
    tpu.vector_store %arg6[%c0_12, %c0_13], %14 {strides = array<i32>} : memref<8x128xf32, #tpu.memory_space<vmem>>, vector<8x128xf32>,
    return
  }
  func.func @transform_0(%arg0: i32) -> (i32, i32) {
    %c0_i32 = arith.constant 0 : i32
    %c0_i32_0 = arith.constant 0 : i32
    return %arg0, %c0_i32 : i32, i32
  }
  func.func @transform_1(%arg0: i32) -> (i32, i32) {
    %c0_i32 = arith.constant 0 : i32
    %c0_i32_0 = arith.constant 0 : i32
    %c0_i32_1 = arith.constant 0 : i32
    return %c0_i32, %c0_i32_0 : i32, i32
  }
  func.func @transform_2(%arg0: i32) -> (i32, i32) {
    %c0_i32 = arith.constant 0 : i32
    %c0_i32_0 = arith.constant 0 : i32
    %c0_i32_1 = arith.constant 0 : i32
    return %c0_i32, %c0_i32_0 : i32, i32
  }
  func.func @transform_3(%arg0: i32) -> (i32, i32) {
    %c0_i32 = arith.constant 0 : i32
    %c0_i32_0 = arith.constant 0 : i32
    %c0_i32_1 = arith.constant 0 : i32
    return %c0_i32, %c0_i32_0 : i32, i32
  }
  func.func @transform_4(%arg0: i32) -> (i32, i32) {
    %c0_i32 = arith.constant 0 : i32
    %c0_i32_0 = arith.constant 0 : i32
    %c0_i32_1 = arith.constant 0 : i32
    return %c0_i32, %c0_i32_0 : i32, i32
  }
  func.func @transform_5(%arg0: i32) -> (i32, i32) {
    %c0_i32 = arith.constant 0 : i32
    %c0_i32_0 = arith.constant 0 : i32
    return %arg0, %c0_i32 : i32, i32
  }
}

</mosaic_0001>

<llo_original>
// kernel: _linear_layers_forward_padded.1
$region0: #{_linear_layers_forward_padded.1}
  #allocation0 [shape = 'u32[]', space=smem, size = 0x4, offset = 0x4, fixed_abs, tag = 'smem constant byte address 0x4 - core index']
  #allocation1 [shape = 'u32[144,128]{1,0:T(1,128)}', space=vmem, size = 0x12000, scoped, tag = 'internal scratch']
  %s0 = inlined_call_operand.vmem [shape: f32[8,128], index: 0, kind: input, shape index: {}]
  %s1 = inlined_call_operand.hbm [shape: f32[128,128], index: 1, kind: input, shape index: {}]
  %s2 = inlined_call_operand.vmem [shape: f32[1,128], index: 2, kind: input, shape index: {}]
  %s3 = inlined_call_operand.hbm [shape: f32[128,128], index: 3, kind: input, shape index: {}]
  %s4 = inlined_call_operand.vmem [shape: f32[1,128], index: 4, kind: input, shape index: {}]
  %s5 = inlined_call_operand.vmem [shape: f32[8,128], index: 5, kind: output, shape index: {}]
  %s6 = sld [smem:[#allocation0]]
  $region38: #{_linear_layers_forward_padded.1} parent=0
    _
  %s8 = ssub.s32 1, %s6
  %s9 = scalar_select 0, %s8, %s6
  $region1: #{_linear_layers_forward_padded.1} parent=0
    #allocation2 [shape = 'u8[65536]{0}', space=vmem, size = 0x10000, scoped, tag = 'input window, operand 1, single buffered']
    #allocation3 [shape = 's32[1]{0}', space=sflag, size = 0x4, scoped, tag = 'scoped memory for _linear_layers_forward_padded.1']
    #allocation4 [shape = 'u8[65536]{0}', space=vmem, size = 0x10000, scoped, tag = 'input window, operand 3, single buffered']
    #allocation5 [shape = 's32[1]{0}', space=sflag, size = 0x4, scoped, tag = 'scoped memory for _linear_layers_forward_padded.1']
    %10 = vsyncpa [#allocation3], 0
    %11 = vsyncpa [#allocation5], 0
    // Predicated region
    $region2: #{_linear_layers_forward_padded.1} parent=1 // pred_check
      _
    $region3: #{_linear_layers_forward_padded.1} parent=1 // pred_check_branch
      %13 = sbr.rel (0) target = $region5
    $region4: #{_linear_layers_forward_padded.1} parent=1 // pred_region
      _
    $region5: #{_linear_layers_forward_padded.1} parent=1 // pred_fallthru
      _
    // Predicated region
    $region6: #{_linear_layers_forward_padded.1} parent=1 // pred_check
      _
    $region7: #{_linear_layers_forward_padded.1} parent=1 // pred_check_branch
      %15 = sbr.rel (0) target = $region9
    $region8: #{_linear_layers_forward_padded.1} parent=1 // pred_region
      %s17 = ssub.s32 2048, 2048
      %18 = vsyncadd [#allocation3], %s17
      %s19 = sshll.u32 [#allocation2], 4
      %s20 = int_to_ptr.vmem [resolvable:$true] %s19
      %25 = dma.hbm_to_vmem [thread:$0]  %s1, 2048, %s20, [#allocation3], 128, 128, 8
    $region9: #{_linear_layers_forward_padded.1} parent=1 // pred_fallthru
      _
    // Predicated region
    $region10: #{_linear_layers_forward_padded.1} parent=1 // pred_check
      _
    $region11: #{_linear_layers_forward_padded.1} parent=1 // pred_check_branch
      %27 = sbr.rel (0) target = $region13
    $region12: #{_linear_layers_forward_padded.1} parent=1 // pred_region
      _
    $region13: #{_linear_layers_forward_padded.1} parent=1 // pred_fallthru
      _
    // Predicated region
    $region14: #{_linear_layers_forward_padded.1} parent=1 // pred_check
      _
    $region15: #{_linear_layers_forward_padded.1} parent=1 // pred_check_branch
      %29 = sbr.rel (0) target = $region17
    $region16: #{_linear_layers_forward_padded.1} parent=1 // pred_region
      %s31 = ssub.s32 2048, 2048
      %32 = vsyncadd [#allocation5], %s31
      %s33 = sshll.u32 [#allocation4], 4
      %s34 = int_to_ptr.vmem [resolvable:$true] %s33
      %39 = dma.hbm_to_vmem [thread:$0]  %s3, 2048, %s34, [#allocation5], 128, 128, 8
    $region17: #{_linear_layers_forward_padded.1} parent=1 // pred_fallthru
      _
    // Predicated region
    $region18: #{_linear_layers_forward_padded.1} parent=1 // pred_check
      _
    $region19: #{_linear_layers_forward_padded.1} parent=1 // pred_check_branch
      %41 = sbr.rel (0) target = $region21
    $region20: #{_linear_layers_forward_padded.1} parent=1 // pred_region
      _
    $region21: #{_linear_layers_forward_padded.1} parent=1 // pred_fallthru
      _
    // Predicated region
    $region22: #{_linear_layers_forward_padded.1} parent=1 // pred_check
      _
    $region23: #{_linear_layers_forward_padded.1} parent=1 // pred_check_branch
      %43 = sbr.rel (0) target = $region25
    $region24: #{_linear_layers_forward_padded.1} parent=1 // pred_region
      %44 = dma.done [#allocation3], 2048
    $region25: #{_linear_layers_forward_padded.1} parent=1 // pred_fallthru
      _
    // Predicated region
    $region26: #{_linear_layers_forward_padded.1} parent=1 // pred_check
      _
    $region27: #{_linear_layers_forward_padded.1} parent=1 // pred_check_branch
      %46 = sbr.rel (0) target = $region29
    $region28: #{_linear_layers_forward_padded.1} parent=1 // pred_region
      %47 = dma.done [#allocation5], 2048
    $region29: #{_linear_layers_forward_padded.1} parent=1 // pred_fallthru
      _
    %v48 = vld [vmem:[%s0] sm:$0xff]
    %v49 = vld [vmem:[#allocation2] sm:$0xff]
    %v50 = vld [vmem:[#allocation2 + $0x8] sm:$0xff]
    %v51 = vld [vmem:[#allocation2 + $0x10] sm:$0xff]
    %v52 = vld [vmem:[#allocation2 + $0x18] sm:$0xff]
    %v53 = vld [vmem:[#allocation2 + $0x20] sm:$0xff]
    %v54 = vld [vmem:[#allocation2 + $0x28] sm:$0xff]
    %v55 = vld [vmem:[#allocation2 + $0x30] sm:$0xff]
    %v56 = vld [vmem:[#allocation2 + $0x38] sm:$0xff]
    %v57 = vld [vmem:[#allocation2 + $0x40] sm:$0xff]
    %v58 = vld [vmem:[#allocation2 + $0x48] sm:$0xff]
    %v59 = vld [vmem:[#allocation2 + $0x50] sm:$0xff]
    %v60 = vld [vmem:[#allocation2 + $0x58] sm:$0xff]
    %v61 = vld [vmem:[#allocation2 + $0x60] sm:$0xff]
    %v62 = vld [vmem:[#allocation2 + $0x68] sm:$0xff]
    %v63 = vld [vmem:[#allocation2 + $0x70] sm:$0xff]
    %v64 = vld [vmem:[#allocation2 + $0x78] sm:$0xff]
    %v65 = vld [vmem:[%s2] sm:$0x1]
    %v67 = vlaneseq
    %v68 = vshrl.u32 %v67, 7
    %v69 = vsub.s32 0, %v68
    %v70 = vrot.slane %v65, %v69
    %72 = vmatprep.subr.mxu0 0.0
    %73 = vmatpush1.msra.mxu0 %v64
    %74 = vmatprep.subr.mxu0 0.0
    %75 = vmatpush1.msra.mxu0 %v63
    %76 = vmatprep.subr.mxu0 0.0
    %77 = vmatpush1.msra.mxu0 %v62
    %78 = vmatprep.subr.mxu0 0.0
    %79 = vmatpush1.msra.mxu0 %v61
    %80 = vmatprep.subr.mxu0 0.0
    %81 = vmatpush1.msra.mxu0 %v60
    %82 = vmatprep.subr.mxu0 0.0
    %83 = vmatpush1.msra.mxu0 %v59
    %84 = vmatprep.subr.mxu0 0.0
    %85 = vmatpush1.msra.mxu0 %v58
    %86 = vmatprep.subr.mxu0 0.0
    %87 = vmatpush1.msra.mxu0 %v57
    %88 = vmatprep.subr.mxu0 0.0
    %89 = vmatpush1.msra.mxu0 %v56
    %90 = vmatprep.subr.mxu0 0.0
    %91 = vmatpush1.msra.mxu0 %v55
    %92 = vmatprep.subr.mxu0 0.0
    %93 = vmatpush1.msra.mxu0 %v54
    %94 = vmatprep.subr.mxu0 0.0
    %95 = vmatpush1.msra.mxu0 %v53
    %96 = vmatprep.subr.mxu0 0.0
    %97 = vmatpush1.msra.mxu0 %v52
    %98 = vmatprep.subr.mxu0 0.0
    %99 = vmatpush1.msra.mxu0 %v51
    %100 = vmatprep.subr.mxu0 0.0
    %101 = vmatpush1.msra.mxu0 %v50
    %102 = vmatprep.subr.mxu0 0.0
    %103 = vmatpush1.msra.mxu0 %v49
    %104 = vmatprep.subr.mxu0 0.0
    %105 = vmatpush2.msra.mxu0 0.0
    %106 = vmatprep.subr.mxu0 0.0
    %107 = vmatpush2.msra.mxu0 0.0
    %108 = vmatprep.subr.mxu0 0.0
    %109 = vmatpush2.msra.mxu0 0.0
    %110 = vmatprep.subr.mxu0 0.0
    %111 = vmatpush2.msra.mxu0 0.0
    %112 = vmatprep.subr.mxu0 0.0
    %113 = vmatpush2.msra.mxu0 0.0
    %114 = vmatprep.subr.mxu0 0.0
    %115 = vmatpush2.msra.mxu0 0.0
    %116 = vmatprep.subr.mxu0 0.0
    %117 = vmatpush2.msra.mxu0 0.0
    %118 = vmatprep.subr.mxu0 0.0
    %119 = vmatpush2.msra.mxu0 0.0
    %120 = vmatprep.subr.mxu0 0.0
    %121 = vmatpush2.msra.mxu0 0.0
    %122 = vmatprep.subr.mxu0 0.0
    %123 = vmatpush2.msra.mxu0 0.0
    %124 = vmatprep.subr.mxu0 0.0
    %125 = vmatpush2.msra.mxu0 0.0
    %126 = vmatprep.subr.mxu0 0.0
    %127 = vmatpush2.msra.mxu0 0.0
    %128 = vmatprep.subr.mxu0 0.0
    %129 = vmatpush2.msra.mxu0 0.0
    %130 = vmatprep.subr.mxu0 0.0
    %131 = vmatpush2.msra.mxu0 0.0
    %132 = vmatprep.subr.mxu0 0.0
    %133 = vmatpush2.msra.mxu0 0.0
    %134 = vmatprep.subr.mxu0 0.0
    %135 = vmatpush2.msra.mxu0 0.0
    %136 = vmatprep.mubr.f32.mxu0 0.0
    %137 = vmatmul.mubr.f32.gmra.mxu0 %v48
    %v138 = vpop.f32.mrf.mxu0
    %v139 = vadd.f32 %v70, %v138
    %v140 = vpop.f32.mrf.mxu0
    %141 = vdwg.mxu0
    %v142 = vmax.f32 %v139, 0.0
    %v143 = vld [vmem:[#allocation4] sm:$0xff]
    %v144 = vld [vmem:[#allocation4 + $0x8] sm:$0xff]
    %v145 = vld [vmem:[#allocation4 + $0x10] sm:$0xff]
    %v146 = vld [vmem:[#allocation4 + $0x18] sm:$0xff]
    %v147 = vld [vmem:[#allocation4 + $0x20] sm:$0xff]
    %v148 = vld [vmem:[#allocation4 + $0x28] sm:$0xff]
    %v149 = vld [vmem:[#allocation4 + $0x30] sm:$0xff]
    %v150 = vld [vmem:[#allocation4 + $0x38] sm:$0xff]
    %v151 = vld [vmem:[#allocation4 + $0x40] sm:$0xff]
    %v152 = vld [vmem:[#allocation4 + $0x48] sm:$0xff]
    %v153 = vld [vmem:[#allocation4 + $0x50] sm:$0xff]
    %v154 = vld [vmem:[#allocation4 + $0x58] sm:$0xff]
    %v155 = vld [vmem:[#allocation4 + $0x60] sm:$0xff]
    %v156 = vld [vmem:[#allocation4 + $0x68] sm:$0xff]
    %v157 = vld [vmem:[#allocation4 + $0x70] sm:$0xff]
    %v158 = vld [vmem:[#allocation4 + $0x78] sm:$0xff]
    %v159 = vld [vmem:[%s4] sm:$0x1]
    %v161 = vlaneseq
    %v162 = vshrl.u32 %v161, 7
    %v163 = vsub.s32 0, %v162
    %v164 = vrot.slane %v159, %v163
    %166 = vmatprep.subr.mxu0 0.0
    %167 = vmatpush1.msra.mxu0 %v158
    %168 = vmatprep.subr.mxu0 0.0
    %169 = vmatpush1.msra.mxu0 %v157
    %170 = vmatprep.subr.mxu0 0.0
    %171 = vmatpush1.msra.mxu0 %v156
    %172 = vmatprep.subr.mxu0 0.0
    %173 = vmatpush1.msra.mxu0 %v155
    %174 = vmatprep.subr.mxu0 0.0
    %175 = vmatpush1.msra.mxu0 %v154
    %176 = vmatprep.subr.mxu0 0.0
    %177 = vmatpush1.msra.mxu0 %v153
    %178 = vmatprep.subr.mxu0 0.0
    %179 = vmatpush1.msra.mxu0 %v152
    %180 = vmatprep.subr.mxu0 0.0
    %181 = vmatpush1.msra.mxu0 %v151
    %182 = vmatprep.subr.mxu0 0.0
    %183 = vmatpush1.msra.mxu0 %v150
    %184 = vmatprep.subr.mxu0 0.0
    %185 = vmatpush1.msra.mxu0 %v149
    %186 = vmatprep.subr.mxu0 0.0
    %187 = vmatpush1.msra.mxu0 %v148
    %188 = vmatprep.subr.mxu0 0.0
    %189 = vmatpush1.msra.mxu0 %v147
    %190 = vmatprep.subr.mxu0 0.0
    %191 = vmatpush1.msra.mxu0 %v146
    %192 = vmatprep.subr.mxu0 0.0
    %193 = vmatpush1.msra.mxu0 %v145
    %194 = vmatprep.subr.mxu0 0.0
    %195 = vmatpush1.msra.mxu0 %v144
    %196 = vmatprep.subr.mxu0 0.0
    %197 = vmatpush1.msra.mxu0 %v143
    %198 = vmatprep.subr.mxu0 0.0
    %199 = vmatpush2.msra.mxu0 0.0
    %200 = vmatprep.subr.mxu0 0.0
    %201 = vmatpush2.msra.mxu0 0.0
    %202 = vmatprep.subr.mxu0 0.0
    %203 = vmatpush2.msra.mxu0 0.0
    %204 = vmatprep.subr.mxu0 0.0
    %205 = vmatpush2.msra.mxu0 0.0
    %206 = vmatprep.subr.mxu0 0.0
    %207 = vmatpush2.msra.mxu0 0.0
    %208 = vmatprep.subr.mxu0 0.0
    %209 = vmatpush2.msra.mxu0 0.0
    %210 = vmatprep.subr.mxu0 0.0
    %211 = vmatpush2.msra.mxu0 0.0
    %212 = vmatprep.subr.mxu0 0.0
    %213 = vmatpush2.msra.mxu0 0.0
    %214 = vmatprep.subr.mxu0 0.0
    %215 = vmatpush2.msra.mxu0 0.0
    %216 = vmatprep.subr.mxu0 0.0
    %217 = vmatpush2.msra.mxu0 0.0
    %218 = vmatprep.subr.mxu0 0.0
    %219 = vmatpush2.msra.mxu0 0.0
    %220 = vmatprep.subr.mxu0 0.0
    %221 = vmatpush2.msra.mxu0 0.0
    %222 = vmatprep.subr.mxu0 0.0
    %223 = vmatpush2.msra.mxu0 0.0
    %224 = vmatprep.subr.mxu0 0.0
    %225 = vmatpush2.msra.mxu0 0.0
    %226 = vmatprep.subr.mxu0 0.0
    %227 = vmatpush2.msra.mxu0 0.0
    %228 = vmatprep.subr.mxu0 0.0
    %229 = vmatpush2.msra.mxu0 0.0
    %230 = vmatprep.mubr.f32.mxu0 0.0
    %231 = vmatmul.mubr.f32.gmra.mxu0 %v142
    %v232 = vpop.f32.mrf.mxu0
    %v233 = vadd.f32 %v164, %v232
    %v234 = vpop.f32.mrf.mxu0
    %235 = vdwg.mxu0
    %v236 = vmax.f32 %v233, 0.0
    %237 = vst [vmem:[%s5] sm:$0xff] %v236
    // Predicated region
    $region30: #{_linear_layers_forward_padded.1} parent=1 // pred_check
      _
    $region31: #{_linear_layers_forward_padded.1} parent=1 // pred_check_branch
      %239 = sbr.rel (0) target = $region33
    $region32: #{_linear_layers_forward_padded.1} parent=1 // pred_region
      _
    $region33: #{_linear_layers_forward_padded.1} parent=1 // pred_fallthru
      _
    // Predicated region
    $region34: #{_linear_layers_forward_padded.1} parent=1 // pred_check
      _
    $region35: #{_linear_layers_forward_padded.1} parent=1 // pred_check_branch
      %241 = sbr.rel (0) target = $region37
    $region36: #{_linear_layers_forward_padded.1} parent=1 // pred_region
      _
    $region37: #{_linear_layers_forward_padded.1} parent=1 // pred_fallthru
      _
    %242 = vsyncpa [#allocation3], 1
    %243 = vsyncpa [#allocation5], 1

// kernel: _linear_layers_forward_padded.1
$region0: #{_linear_layers_forward_padded.1}
  #allocation0 [shape = 'u32[]', space=smem, size = 0x4, offset = 0x4, fixed_abs, tag = 'smem constant byte address 0x4 - core index']
  #allocation1 [shape = 'u32[144,128]{1,0:T(1,128)}', space=vmem, size = 0x12000, scoped, tag = 'internal scratch']
  %s0 = inlined_call_operand.vmem [shape: f32[8,128], index: 0, kind: input, shape index: {}]
  %s1 = inlined_call_operand.hbm [shape: f32[128,128], index: 1, kind: input, shape index: {}]
  %s2 = inlined_call_operand.vmem [shape: f32[1,128], index: 2, kind: input, shape index: {}]
  %s3 = inlined_call_operand.hbm [shape: f32[128,128], index: 3, kind: input, shape index: {}]
  %s4 = inlined_call_operand.vmem [shape: f32[1,128], index: 4, kind: input, shape index: {}]
  %s5 = inlined_call_operand.vmem [shape: f32[8,128], index: 5, kind: output, shape index: {}]
  %s6 = sld [smem:[#allocation0]]
  $region38: #{_linear_layers_forward_padded.1} parent=0
    _
  %s8 = ssub.s32 1, %s6
  %s9 = scalar_select 0, %s8, %s6
  $region1: #{_linear_layers_forward_padded.1} parent=0
    #allocation2 [shape = 'u8[65536]{0}', space=vmem, size = 0x10000, scoped, tag = 'input window, operand 1, single buffered']
    #allocation3 [shape = 's32[1]{0}', space=sflag, size = 0x4, scoped, tag = 'scoped memory for _linear_layers_forward_padded.1']
    #allocation4 [shape = 'u8[65536]{0}', space=vmem, size = 0x10000, scoped, tag = 'input window, operand 3, single buffered']
    #allocation5 [shape = 's32[1]{0}', space=sflag, size = 0x4, scoped, tag = 'scoped memory for _linear_layers_forward_padded.1']
    %10 = vsyncpa [#allocation3], 0
    %11 = vsyncpa [#allocation5], 0
    // Predicated region
    $region2: #{_linear_layers_forward_padded.1} parent=1 // pred_check
      _
    $region3: #{_linear_layers_forward_padded.1} parent=1 // pred_check_branch
      %13 = sbr.rel (0) target = $region5
    $region4: #{_linear_layers_forward_padded.1} parent=1 // pred_region
      _
    $region5: #{_linear_layers_forward_padded.1} parent=1 // pred_fallthru
      _
    // Predicated region
    $region6: #{_linear_layers_forward_padded.1} parent=1 // pred_check
      _
    $region7: #{_linear_layers_forward_padded.1} parent=1 // pred_check_branch
      %15 = sbr.rel (0) target = $region9
    $region8: #{_linear_layers_forward_padded.1} parent=1 // pred_region
      %s17 = ssub.s32 2048, 2048
      %18 = vsyncadd [#allocation3], %s17
      %s19 = sshll.u32 [#allocation2], 4
      %s20 = int_to_ptr.vmem [resolvable:$true] %s19
      %25 = dma.hbm_to_vmem [thread:$0]  %s1, 2048, %s20, [#allocation3], 128, 128, 8
    $region9: #{_linear_layers_forward_padded.1} parent=1 // pred_fallthru
      _
    // Predicated region
    $region10: #{_linear_layers_forward_padded.1} parent=1 // pred_check
      _
    $region11: #{_linear_layers_forward_padded.1} parent=1 // pred_check_branch
      %27 = sbr.rel (0) target = $region13
    $region12: #{_linear_layers_forward_padded.1} parent=1 // pred_region
      _
    $region13: #{_linear_layers_forward_padded.1} parent=1 // pred_fallthru
      _
    // Predicated region
    $region14: #{_linear_layers_forward_padded.1} parent=1 // pred_check
      _
    $region15: #{_linear_layers_forward_padded.1} parent=1 // pred_check_branch
      %29 = sbr.rel (0) target = $region17
    $region16: #{_linear_layers_forward_padded.1} parent=1 // pred_region
      %s31 = ssub.s32 2048, 2048
      %32 = vsyncadd [#allocation5], %s31
      %s33 = sshll.u32 [#allocation4], 4
      %s34 = int_to_ptr.vmem [resolvable:$true] %s33
      %39 = dma.hbm_to_vmem [thread:$0]  %s3, 2048, %s34, [#allocation5], 128, 128, 8
    $region17: #{_linear_layers_forward_padded.1} parent=1 // pred_fallthru
      _
    // Predicated region
    $region18: #{_linear_layers_forward_padded.1} parent=1 // pred_check
      _
    $region19: #{_linear_layers_forward_padded.1} parent=1 // pred_check_branch
      %41 = sbr.rel (0) target = $region21
    $region20: #{_linear_layers_forward_padded.1} parent=1 // pred_region
      _
    $region21: #{_linear_layers_forward_padded.1} parent=1 // pred_fallthru
      _
    // Predicated region
    $region22: #{_linear_layers_forward_padded.1} parent=1 // pred_check
      _
    $region23: #{_linear_layers_forward_padded.1} parent=1 // pred_check_branch
      %43 = sbr.rel (0) target = $region25
    $region24: #{_linear_layers_forward_padded.1} parent=1 // pred_region
      %44 = dma.done [#allocation3], 2048
    $region25: #{_linear_layers_forward_padded.1} parent=1 // pred_fallthru
      _
    // Predicated region
    $region26: #{_linear_layers_forward_padded.1} parent=1 // pred_check
      _
    $region27: #{_linear_layers_forward_padded.1} parent=1 // pred_check_branch
      %46 = sbr.rel (0) target = $region29
    $region28: #{_linear_layers_forward_padded.1} parent=1 // pred_region
      %47 = dma.done [#allocation5], 2048
    $region29: #{_linear_layers_forward_padded.1} parent=1 // pred_fallthru
      _
    %v48 = vld [vmem:[%s0] sm:$0xff]
    %v49 = vld [vmem:[#allocation2] sm:$0xff]
    %v50 = vld [vmem:[#allocation2 + $0x8] sm:$0xff]
    %v51 = vld [vmem:[#allocation2 + $0x10] sm:$0xff]
    %v52 = vld [vmem:[#allocation2 + $0x18] sm:$0xff]
    %v53 = vld [vmem:[#allocation2 + $0x20] sm:$0xff]
    %v54 = vld [vmem:[#allocation2 + $0x28] sm:$0xff]
    %v55 = vld [vmem:[#allocation2 + $0x30] sm:$0xff]
    %v56 = vld [vmem:[#allocation2 + $0x38] sm:$0xff]
    %v57 = vld [vmem:[#allocation2 + $0x40] sm:$0xff]
    %v58 = vld [vmem:[#allocation2 + $0x48] sm:$0xff]
    %v59 = vld [vmem:[#allocation2 + $0x50] sm:$0xff]
    %v60 = vld [vmem:[#allocation2 + $0x58] sm:$0xff]
    %v61 = vld [vmem:[#allocation2 + $0x60] sm:$0xff]
    %v62 = vld [vmem:[#allocation2 + $0x68] sm:$0xff]
    %v63 = vld [vmem:[#allocation2 + $0x70] sm:$0xff]
    %v64 = vld [vmem:[#allocation2 + $0x78] sm:$0xff]
    %v65 = vld [vmem:[%s2] sm:$0x1]
    %v67 = vlaneseq
    %v68 = vshrl.u32 %v67, 7
    %v69 = vsub.s32 0, %v68
    %v70 = vrot.slane %v65, %v69
    %72 = vmatprep.subr.mxu0 0.0
    %73 = vmatpush1.msra.mxu0 %v64
    %74 = vmatprep.subr.mxu0 0.0
    %75 = vmatpush1.msra.mxu0 %v63
    %76 = vmatprep.subr.mxu0 0.0
    %77 = vmatpush1.msra.mxu0 %v62
    %78 = vmatprep.subr.mxu0 0.0
    %79 = vmatpush1.msra.mxu0 %v61
    %80 = vmatprep.subr.mxu0 0.0
    %81 = vmatpush1.msra.mxu0 %v60
    %82 = vmatprep.subr.mxu0 0.0
    %83 = vmatpush1.msra.mxu0 %v59
    %84 = vmatprep.subr.mxu0 0.0
    %85 = vmatpush1.msra.mxu0 %v58
    %86 = vmatprep.subr.mxu0 0.0
    %87 = vmatpush1.msra.mxu0 %v57
    %88 = vmatprep.subr.mxu0 0.0
    %89 = vmatpush1.msra.mxu0 %v56
    %90 = vmatprep.subr.mxu0 0.0
    %91 = vmatpush1.msra.mxu0 %v55
    %92 = vmatprep.subr.mxu0 0.0
    %93 = vmatpush1.msra.mxu0 %v54
    %94 = vmatprep.subr.mxu0 0.0
    %95 = vmatpush1.msra.mxu0 %v53
    %96 = vmatprep.subr.mxu0 0.0
    %97 = vmatpush1.msra.mxu0 %v52
    %98 = vmatprep.subr.mxu0 0.0
    %99 = vmatpush1.msra.mxu0 %v51
    %100 = vmatprep.subr.mxu0 0.0
    %101 = vmatpush1.msra.mxu0 %v50
    %102 = vmatprep.subr.mxu0 0.0
    %103 = vmatpush1.msra.mxu0 %v49
    %104 = vmatprep.subr.mxu0 0.0
    %105 = vmatpush2.msra.mxu0 0.0
    %106 = vmatprep.subr.mxu0 0.0
    %107 = vmatpush2.msra.mxu0 0.0
    %108 = vmatprep.subr.mxu0 0.0
    %109 = vmatpush2.msra.mxu0 0.0
    %110 = vmatprep.subr.mxu0 0.0
    %111 = vmatpush2.msra.mxu0 0.0
    %112 = vmatprep.subr.mxu0 0.0
    %113 = vmatpush2.msra.mxu0 0.0
    %114 = vmatprep.subr.mxu0 0.0
    %115 = vmatpush2.msra.mxu0 0.0
    %116 = vmatprep.subr.mxu0 0.0
    %117 = vmatpush2.msra.mxu0 0.0
    %118 = vmatprep.subr.mxu0 0.0
    %119 = vmatpush2.msra.mxu0 0.0
    %120 = vmatprep.subr.mxu0 0.0
    %121 = vmatpush2.msra.mxu0 0.0
    %122 = vmatprep.subr.mxu0 0.0
    %123 = vmatpush2.msra.mxu0 0.0
    %124 = vmatprep.subr.mxu0 0.0
    %125 = vmatpush2.msra.mxu0 0.0
    %126 = vmatprep.subr.mxu0 0.0
    %127 = vmatpush2.msra.mxu0 0.0
    %128 = vmatprep.subr.mxu0 0.0
    %129 = vmatpush2.msra.mxu0 0.0
    %130 = vmatprep.subr.mxu0 0.0
    %131 = vmatpush2.msra.mxu0 0.0
    %132 = vmatprep.subr.mxu0 0.0
    %133 = vmatpush2.msra.mxu0 0.0
    %134 = vmatprep.subr.mxu0 0.0
    %135 = vmatpush2.msra.mxu0 0.0
    %136 = vmatprep.mubr.f32.mxu0 0.0
    %137 = vmatmul.mubr.f32.gmra.mxu0 %v48
    %v138 = vpop.f32.mrf.mxu0
    %v139 = vadd.f32 %v70, %v138
    %v140 = vpop.f32.mrf.mxu0
    %141 = vdwg.mxu0
    %v142 = vmax.f32 %v139, 0.0
    %v143 = vld [vmem:[#allocation4] sm:$0xff]
    %v144 = vld [vmem:[#allocation4 + $0x8] sm:$0xff]
    %v145 = vld [vmem:[#allocation4 + $0x10] sm:$0xff]
    %v146 = vld [vmem:[#allocation4 + $0x18] sm:$0xff]
    %v147 = vld [vmem:[#allocation4 + $0x20] sm:$0xff]
    %v148 = vld [vmem:[#allocation4 + $0x28] sm:$0xff]
    %v149 = vld [vmem:[#allocation4 + $0x30] sm:$0xff]
    %v150 = vld [vmem:[#allocation4 + $0x38] sm:$0xff]
    %v151 = vld [vmem:[#allocation4 + $0x40] sm:$0xff]
    %v152 = vld [vmem:[#allocation4 + $0x48] sm:$0xff]
    %v153 = vld [vmem:[#allocation4 + $0x50] sm:$0xff]
    %v154 = vld [vmem:[#allocation4 + $0x58] sm:$0xff]
    %v155 = vld [vmem:[#allocation4 + $0x60] sm:$0xff]
    %v156 = vld [vmem:[#allocation4 + $0x68] sm:$0xff]
    %v157 = vld [vmem:[#allocation4 + $0x70] sm:$0xff]
    %v158 = vld [vmem:[#allocation4 + $0x78] sm:$0xff]
    %v159 = vld [vmem:[%s4] sm:$0x1]
    %v161 = vlaneseq
    %v162 = vshrl.u32 %v161, 7
    %v163 = vsub.s32 0, %v162
    %v164 = vrot.slane %v159, %v163
    %166 = vmatprep.subr.mxu0 0.0
    %167 = vmatpush1.msra.mxu0 %v158
    %168 = vmatprep.subr.mxu0 0.0
    %169 = vmatpush1.msra.mxu0 %v157
    %170 = vmatprep.subr.mxu0 0.0
    %171 = vmatpush1.msra.mxu0 %v156
    %172 = vmatprep.subr.mxu0 0.0
    %173 = vmatpush1.msra.mxu0 %v155
    %174 = vmatprep.subr.mxu0 0.0
    %175 = vmatpush1.msra.mxu0 %v154
    %176 = vmatprep.subr.mxu0 0.0
    %177 = vmatpush1.msra.mxu0 %v153
    %178 = vmatprep.subr.mxu0 0.0
    %179 = vmatpush1.msra.mxu0 %v152
    %180 = vmatprep.subr.mxu0 0.0
    %181 = vmatpush1.msra.mxu0 %v151
    %182 = vmatprep.subr.mxu0 0.0
    %183 = vmatpush1.msra.mxu0 %v150
    %184 = vmatprep.subr.mxu0 0.0
    %185 = vmatpush1.msra.mxu0 %v149
    %186 = vmatprep.subr.mxu0 0.0
    %187 = vmatpush1.msra.mxu0 %v148
    %188 = vmatprep.subr.mxu0 0.0
    %189 = vmatpush1.msra.mxu0 %v147
    %190 = vmatprep.subr.mxu0 0.0
    %191 = vmatpush1.msra.mxu0 %v146
    %192 = vmatprep.subr.mxu0 0.0
    %193 = vmatpush1.msra.mxu0 %v145
    %194 = vmatprep.subr.mxu0 0.0
    %195 = vmatpush1.msra.mxu0 %v144
    %196 = vmatprep.subr.mxu0 0.0
    %197 = vmatpush1.msra.mxu0 %v143
    %198 = vmatprep.subr.mxu0 0.0
    %199 = vmatpush2.msra.mxu0 0.0
    %200 = vmatprep.subr.mxu0 0.0
    %201 = vmatpush2.msra.mxu0 0.0
    %202 = vmatprep.subr.mxu0 0.0
    %203 = vmatpush2.msra.mxu0 0.0
    %204 = vmatprep.subr.mxu0 0.0
    %205 = vmatpush2.msra.mxu0 0.0
    %206 = vmatprep.subr.mxu0 0.0
    %207 = vmatpush2.msra.mxu0 0.0
    %208 = vmatprep.subr.mxu0 0.0
    %209 = vmatpush2.msra.mxu0 0.0
    %210 = vmatprep.subr.mxu0 0.0
    %211 = vmatpush2.msra.mxu0 0.0
    %212 = vmatprep.subr.mxu0 0.0
    %213 = vmatpush2.msra.mxu0 0.0
    %214 = vmatprep.subr.mxu0 0.0
    %215 = vmatpush2.msra.mxu0 0.0
    %216 = vmatprep.subr.mxu0 0.0
    %217 = vmatpush2.msra.mxu0 0.0
    %218 = vmatprep.subr.mxu0 0.0
    %219 = vmatpush2.msra.mxu0 0.0
    %220 = vmatprep.subr.mxu0 0.0
    %221 = vmatpush2.msra.mxu0 0.0
    %222 = vmatprep.subr.mxu0 0.0
    %223 = vmatpush2.msra.mxu0 0.0
    %224 = vmatprep.subr.mxu0 0.0
    %225 = vmatpush2.msra.mxu0 0.0
    %226 = vmatprep.subr.mxu0 0.0
    %227 = vmatpush2.msra.mxu0 0.0
    %228 = vmatprep.subr.mxu0 0.0
    %229 = vmatpush2.msra.mxu0 0.0
    %230 = vmatprep.mubr.f32.mxu0 0.0
    %231 = vmatmul.mubr.f32.gmra.mxu0 %v142
    %v232 = vpop.f32.mrf.mxu0
    %v233 = vadd.f32 %v164, %v232
    %v234 = vpop.f32.mrf.mxu0
    %235 = vdwg.mxu0
    %v236 = vmax.f32 %v233, 0.0
    %237 = vst [vmem:[%s5] sm:$0xff] %v236
    // Predicated region
    $region30: #{_linear_layers_forward_padded.1} parent=1 // pred_check
      _
    $region31: #{_linear_layers_forward_padded.1} parent=1 // pred_check_branch
      %239 = sbr.rel (0) target = $region33
    $region32: #{_linear_layers_forward_padded.1} parent=1 // pred_region
      _
    $region33: #{_linear_layers_forward_padded.1} parent=1 // pred_fallthru
      _
    // Predicated region
    $region34: #{_linear_layers_forward_padded.1} parent=1 // pred_check
      _
    $region35: #{_linear_layers_forward_padded.1} parent=1 // pred_check_branch
      %241 = sbr.rel (0) target = $region37
    $region36: #{_linear_layers_forward_padded.1} parent=1 // pred_region
      _
    $region37: #{_linear_layers_forward_padded.1} parent=1 // pred_fallthru
      _
    %242 = vsyncpa [#allocation3], 1
    %243 = vsyncpa [#allocation5], 1

</llo_original>
